<compile_context>
chip_gen: v6e
topology: v6e:2x2x1
jax: 0.10.0
libtpu: 0.0.40
codegen_flags: <defaults>
</compile_context>

<pallas_src>
import functools

import jax
import jax.numpy as jnp
from jax import lax
from jax.experimental import pallas as pl
from jax.experimental.pallas import tpu as pltpu

LOG2 = 0.6931471824645996  # torch.log(torch.tensor(2.0)).item() in float32


def _shifted_softplus(x):
    # ShiftedSoftplus.forward: softplus(x) - log(2), numerically stable form.
    return jnp.maximum(x, 0.0) + jnp.log1p(jnp.exp(-jnp.abs(x))) - LOG2


def _round_up(x, m):
    return (x + m - 1) // m * m


def _readout_kernel(batch_ref, h_ref, w1_ref, b1_ref, w2_ref, b2_ref, o_ref,
                    acc_ref, *, n_nodes, tile_n):
    k = pl.program_id(0)

    @pl.when(k == 0)
    def _init():
        acc_ref[...] = jnp.zeros_like(acc_ref)

    g_pad = acc_ref.shape[0]
    base = k * tile_n

    # --- node-validity mask for the (possibly ragged) last tile -----------------------
    # Rows past n_nodes contain arbitrary bits (no wrapper-side zero pad any more); the
    # one-hot mask alone does NOT protect the accumulator (0 * NaN = NaN), so zero them.
    row_idx = base + lax.broadcasted_iota(jnp.int32, (tile_n, 1), 0)        # (TILE_N, 1)
    valid_rows = row_idx < n_nodes
    h_tile = jnp.where(valid_rows, h_ref[...], jnp.zeros_like(h_ref[...]))  # (TILE_N, 128)

    # Garbage batch ids of invalid nodes are also forced to -1 (never matches a segment).
    col_idx = base + lax.broadcasted_iota(jnp.int32, (1, tile_n), 1)        # (1, TILE_N)
    batch_tile = jnp.where(col_idx < n_nodes, batch_ref[...], -1)           # (1, TILE_N)

    # --- per-tile one-hot mask: (G_pad, TILE_N); never the full (G, N) mask ------------
    seg_ids = lax.broadcasted_iota(jnp.int32, (g_pad, tile_n), 0)
    mask = (seg_ids == batch_tile).astype(h_tile.dtype)                     # exact 0/1

    # --- segment-sum contribution of this node tile (MXU, f32 accumulation) ------------
    acc_ref[...] += jnp.dot(mask, h_tile, preferred_element_type=jnp.float32)

    # --- finalize: tiny MLP head (with ShiftedSoftplus) runs once, on the last step ----
    # o_ref's block index is constant across the reduction grid and is only written here;
    # end-of-grid writeback flushes the final contents (earlier steps never store).
    @pl.when(k == pl.num_programs(0) - 1)
    def _finalize():
        pooled = acc_ref[...]                                               # (G_pad, 128) f32
        z1 = jnp.dot(pooled, w1_ref[...],
                     preferred_element_type=jnp.float32) + b1_ref[...]
        z1 = _shifted_softplus(z1)                                          # (G_pad, 32)
        # Linear(32, 1) as a VPU multiply + lane reduce (w2 passed as a (1, 32) row).
        z2 = jnp.sum(z1 * w2_ref[...], axis=-1, keepdims=True) + b2_ref[...]
        z2 = _shifted_softplus(z2)                                          # (G_pad, 1)
        o_ref[...] = z2


def general_readout_layer(h, batch, w1, b1, w2, b2, num_graphs,
                          *, tile_n=None, pool_in_bf16=True):
    """h: [N, 128]; batch: [N] int32 graph ids. Returns [num_graphs, 1] float32."""
    n_nodes, d_in = h.shape
    d_hid, d_out = w2.shape
    assert d_out == 1, "default GeneralReadOutLayer config ends in a 1-wide Linear"

    if pool_in_bf16 and h.dtype != jnp.bfloat16:
        # Halves the dominant HBM stream into the kernel.  Ideally the caller already
        # stores h in bf16 so this cast fuses with the producer.
        h = h.astype(jnp.bfloat16)

    itemsize = jnp.dtype(h.dtype).itemsize

    # Large default tiles (per-step overhead ~0.35 us dominates small tiles on v6e/v7x);
    # clamp to a multiple of 128 (lane grain of the batch-id block).
    if tile_n is None:
        tile_n = 8192 if itemsize == 2 else 4096
    tile_n = max(128, (tile_n // 128) * 128)

    # Sublane grain of the one-hot mask feeding the MXU: 16 for bf16, 8 for f32.
    g_pad = _round_up(num_graphs, 16 if itemsize == 2 else 8)

    # Scale guard: keep (mask temp + 2 double-buffered h tiles + f32 accumulator) well
    # under scoped VMEM on every chip generation; shrink the tile before overflowing.
    budget = 12 * 1024 * 1024

    def _footprint(t):
        return (g_pad * t * itemsize          # (G_pad, TILE_N) one-hot mask temp
                + 2 * t * d_in * itemsize     # double-buffered h tiles
                + g_pad * d_in * 4)           # f32 accumulator

    while tile_n > 256 and _footprint(tile_n) > budget:
        tile_n //= 2

    if n_nodes <= tile_n:
        tile_n = n_nodes        # single full-extent block (legal: equals full array dims)
    grid = (pl.cdiv(n_nodes, tile_n),)      # no zero-pad copy of h; ragged tile masked in-kernel

    batch_2d = batch.astype(jnp.int32).reshape(1, n_nodes)
    b1_2d = b1.reshape(1, d_hid)
    w2_row = w2.reshape(1, d_hid)           # (32, 1) -> (1, 32) for the VPU reduce
    b2_2d = b2.reshape(1, 1)

    out = pl.pallas_call(
        functools.partial(_readout_kernel, n_nodes=n_nodes, tile_n=tile_n),
        out_shape=jax.ShapeDtypeStruct((g_pad, 1), jnp.float32),
        grid_spec=pltpu.PrefetchScalarGridSpec(
            num_scalar_prefetch=0,
            grid=grid,
            in_specs=[
                pl.BlockSpec((1, tile_n), lambda k: (0, k)),       # batch ids (node tile)
                pl.BlockSpec((tile_n, d_in), lambda k: (k, 0)),    # node features (node tile)
                pl.BlockSpec((d_in, d_hid), lambda k: (0, 0)),     # W1 (resident)
                pl.BlockSpec((1, d_hid), lambda k: (0, 0)),        # b1
                pl.BlockSpec((1, d_hid), lambda k: (0, 0)),        # W2 row
                pl.BlockSpec((1, 1), lambda k: (0, 0)),            # b2
            ],
            out_specs=pl.BlockSpec((g_pad, 1), lambda k: (0, 0)),
            scratch_shapes=[pltpu.VMEM((g_pad, d_in), jnp.float32)],
        ),
        compiler_params=pltpu.CompilerParams(
            dimension_semantics=("arbitrary",),     # node axis is the reduction axis
        ),
    )(batch_2d, h, w1, b1_2d, w2_row, b2_2d)

    # For very large num_graphs, emit a lane-dense (1, G) output instead of (G, 1);
    # negligible at the G sizes used here.
    return out[:num_graphs]


def _reference(h, batch, w1, b1, w2, b2, num_graphs, *, pool_in_bf16=False):
    # Plain-JAX reference.  When pool_in_bf16, apply the same bf16 rounding of h that the
    # kernel's bf16 pooling applies (mask stays exact, accumulation stays f32).
    hp = h.astype(jnp.bfloat16).astype(jnp.float32) if pool_in_bf16 else h.astype(jnp.float32)
    pooled = jax.ops.segment_sum(hp, batch, num_segments=num_graphs)
    z1 = _shifted_softplus(
        jnp.dot(pooled, w1, precision=lax.Precision.HIGHEST) + b1)
    z2 = _shifted_softplus(
        jnp.dot(z1, w2, precision=lax.Precision.HIGHEST) + b2)
    return z2


if __name__ == "__main__":
    key = jax.random.PRNGKey(0)
    k_h, k_w1, k_b1, k_w2, k_b2, k_h2 = jax.random.split(key, 6)

    D_IN, D_HID, D_OUT = 128, 32, 1

    # deterministic parameter init (PyTorch Linear-style uniform bounds)
    bound1 = 1.0 / (D_IN ** 0.5)
    w1 = jax.random.uniform(k_w1, (D_IN, D_HID), jnp.float32, -bound1, bound1)
    b1 = jax.random.uniform(k_b1, (D_HID,), jnp.float32, -bound1, bound1)
    bound2 = 1.0 / (D_HID ** 0.5)
    w2 = jax.random.uniform(k_w2, (D_HID, D_OUT), jnp.float32, -bound2, bound2)
    b2 = jax.random.uniform(k_b2, (D_OUT,), jnp.float32, -bound2, bound2)

    # --- test 1: tiny batch (2 graphs x 4 nodes), exact f32 pooling, single full block ---
    N1, G1 = 8, 2
    h1 = jax.random.normal(k_h, (N1, D_IN), dtype=jnp.float32)
    batch1 = jnp.array([0, 0, 0, 0, 1, 1, 1, 1], dtype=jnp.int32)

    fn_f32 = jax.jit(functools.partial(general_readout_layer, num_graphs=G1,
                                       pool_in_bf16=False))
    out1 = jax.block_until_ready(fn_f32(h1, batch1, w1, b1, w2, b2))
    ref1 = _reference(h1, batch1, w1, b1, w2, b2, G1, pool_in_bf16=False)
    assert out1.shape == (G1, 1)
    assert jnp.allclose(out1, ref1, atol=1e-4, rtol=1e-4), (out1, ref1)

    # --- test 2: multi-tile grid with ragged last tile (no h padding) + bf16 pooling ---
    N2, G2 = 300, 5
    h2 = jax.random.normal(k_h2, (N2, D_IN), dtype=jnp.float32)
    sizes = jnp.array([70, 50, 90, 60, 30], dtype=jnp.int32)
    batch2 = jnp.repeat(jnp.arange(G2, dtype=jnp.int32), sizes, total_repeat_length=N2)

    fn_bf16 = jax.jit(functools.partial(general_readout_layer, num_graphs=G2,
                                        tile_n=128, pool_in_bf16=True))
    out2 = jax.block_until_ready(fn_bf16(h2, batch2, w1, b1, w2, b2))
    ref2 = _reference(h2, batch2, w1, b1, w2, b2, G2, pool_in_bf16=True)
    assert out2.shape == (G2, 1)
    assert jnp.allclose(out2, ref2, atol=1e-4, rtol=1e-4), (out2, ref2)

    print("KERNEL_OK")
</pallas_src>

<mosaic_0001>
module attributes {stable_mosaic.version = 11 : i64} {
  func.func @_readout_kernel(%arg0: i32, %arg1: memref<1x8xi32, #tpu.memory_space<vmem>>, %arg2: memref<8x128xf32, #tpu.memory_space<vmem>>, %arg3: memref<128x32xf32, #tpu.memory_space<vmem>>, %arg4: memref<1x32xf32, #tpu.memory_space<vmem>>, %arg5: memref<1x32xf32, #tpu.memory_space<vmem>>, %arg6: memref<1x1xf32, #tpu.memory_space<vmem>>, %arg7: memref<8x1xf32, #tpu.memory_space<vmem>>, %arg8: memref<8x128xf32, #tpu.memory_space<vmem>>) attributes {dimension_semantics = [#tpu.dimension_semantics<arbitrary>], iteration_bounds = array<i64: 1>, scalar_prefetch = 0 : i64, scratch_operands = 1 : i64, tpu.core_type = #tpu.core_type<tc>, window_params = [{transform_indices = @transform_0, window_bounds = array<i64: 1, 8>}, {transform_indices = @transform_1, window_bounds = array<i64: 8, 128>}, {pipeline_mode = #tpu.pipeline_mode<synchronous>, transform_indices = @transform_2, window_bounds = array<i64: 128, 32>}, {pipeline_mode = #tpu.pipeline_mode<synchronous>, transform_indices = @transform_3, window_bounds = array<i64: 1, 32>}, {pipeline_mode = #tpu.pipeline_mode<synchronous>, transform_indices = @transform_4, window_bounds = array<i64: 1, 32>}, {pipeline_mode = #tpu.pipeline_mode<synchronous>, transform_indices = @transform_5, window_bounds = array<i64: 1, 1>}, {pipeline_mode = #tpu.pipeline_mode<synchronous>, transform_indices = @transform_6, window_bounds = array<i64: 8, 1>}]} {
    %c0_i32 = arith.constant 0 : i32
    %0 = arith.cmpi eq, %arg0, %c0_i32 : i32
    %1 = arith.extui %0 : i1 to i32
    %c0_i32_0 = arith.constant 0 : i32
    %2 = arith.cmpi ne, %1, %c0_i32_0 : i32
    scf.if %2 {
      %cst_13 = arith.constant 0.000000e+00 : f32
      %34 = vector.broadcast %cst_13 : f32 to vector<8x128xf32>
      %c0_14 = arith.constant 0 : index
      %c0_15 = arith.constant 0 : index
      %35 = vector.load %arg8[%c0_14, %c0_15] : memref<8x128xf32, #tpu.memory_space<vmem>>, vector<8x128xf32>
      tpu.vector_store %arg8[%c0_14, %c0_15], %34 {strides = array<i32>} : memref<8x128xf32, #tpu.memory_space<vmem>>, vector<8x128xf32>,
    } else {
    }
    %c8_i32 = arith.constant 8 : i32
    %3 = arith.muli %arg0, %c8_i32 : i32
    %4 = tpu.iota {dimensions = array<i32: 0>} : vector<8x1xi32>
    %5 = vector.broadcast %3 : i32 to vector<8x1xi32>
    %6 = arith.addi %5, %4 : vector<8x1xi32>
    %c8_i32_1 = arith.constant 8 : i32
    %7 = vector.broadcast %c8_i32_1 : i32 to vector<8x1xi32>
    %8 = arith.cmpi slt, %6, %7 : vector<8x1xi32>
    %c0 = arith.constant 0 : index
    %c0_2 = arith.constant 0 : index
    %9 = vector.load %arg2[%c0, %c0_2] : memref<8x128xf32, #tpu.memory_space<vmem>>, vector<8x128xf32>
    %cst = arith.constant 0.000000e+00 : f32
    %10 = vector.broadcast %cst : f32 to vector<8x128xf32>
    %11 = vector.shape_cast %8 : vector<8x1xi1> to vector<8x1xi1>
    %12 = vector.broadcast %11 : vector<8x1xi1> to vector<8x128xi1>
    %13 = arith.select %12, %9, %10 : vector<8x128xi1>, vector<8x128xf32>
    %14 = tpu.iota {dimensions = array<i32: 1>} : vector<1x8xi32>
    %15 = vector.broadcast %3 : i32 to vector<1x8xi32>
    %16 = arith.addi %15, %14 : vector<1x8xi32>
    %c8_i32_3 = arith.constant 8 : i32
    %17 = vector.broadcast %c8_i32_3 : i32 to vector<1x8xi32>
    %18 = arith.cmpi slt, %16, %17 : vector<1x8xi32>
    %c0_4 = arith.constant 0 : index
    %c0_5 = arith.constant 0 : index
    %19 = vector.load %arg1[%c0_4, %c0_5] : memref<1x8xi32, #tpu.memory_space<vmem>>, vector<1x8xi32>
    %c-1_i32 = arith.constant -1 : i32
    %20 = vector.broadcast %c-1_i32 : i32 to vector<1x8xi32>
    %21 = arith.select %18, %19, %20 : vector<1x8xi1>, vector<1x8xi32>
    %22 = tpu.iota {dimensions = array<i32: 0>} : vector<8x8xi32>
    %23 = vector.broadcast %21 : vector<1x8xi32> to vector<8x8xi32>
    %24 = arith.cmpi eq, %22, %23 : vector<8x8xi32>
    %25 = arith.extui %24 : vector<8x8xi1> to vector<8x8xi32>
    %26 = arith.sitofp %25 : vector<8x8xi32> to vector<8x8xf32>
    %c0_6 = arith.constant 0 : index
    %c0_7 = arith.constant 0 : index
    %27 = vector.load %arg8[%c0_6, %c0_7] : memref<8x128xf32, #tpu.memory_space<vmem>>, vector<8x128xf32>
    %cst_8 = arith.constant dense<0.000000e+00> : vector<8x128xf32>
    %28 = tpu.matmul %26, %13, %cst_8 {dimension_numbers = #tpu.dot_dimension_numbers<[1], [0], [0], [1], [0, 0, 1, 1], [], []>} : vector<8x8xf32>, vector<8x128xf32>, vector<8x128xf32> -> vector<8x128xf32>
    %29 = arith.addf %27, %28 : vector<8x128xf32>
    %c0_9 = arith.constant 0 : index
    %c0_10 = arith.constant 0 : index
    %30 = vector.load %arg8[%c0_9, %c0_10] : memref<8x128xf32, #tpu.memory_space<vmem>>, vector<8x128xf32>
    tpu.vector_store %arg8[%c0_9, %c0_10], %29 {strides = array<i32>} : memref<8x128xf32, #tpu.memory_space<vmem>>, vector<8x128xf32>,
    %c0_i32_11 = arith.constant 0 : i32
    %31 = arith.cmpi eq, %arg0, %c0_i32_11 : i32
    %32 = arith.extui %31 : i1 to i32
    %c0_i32_12 = arith.constant 0 : i32
    %33 = arith.cmpi ne, %32, %c0_i32_12 : i32
    scf.if %33 {
      %c0_13 = arith.constant 0 : index
      %c0_14 = arith.constant 0 : index
      %34 = vector.load %arg8[%c0_13, %c0_14] : memref<8x128xf32, #tpu.memory_space<vmem>>, vector<8x128xf32>
      %c0_15 = arith.constant 0 : index
      %c0_16 = arith.constant 0 : index
      %35 = vector.load %arg3[%c0_15, %c0_16] : memref<128x32xf32, #tpu.memory_space<vmem>>, vector<128x32xf32>
      %cst_17 = arith.constant dense<0.000000e+00> : vector<8x32xf32>
      %36 = tpu.matmul %34, %35, %cst_17 {dimension_numbers = #tpu.dot_dimension_numbers<[1], [0], [0], [1], [0, 0, 1, 1], [], []>} : vector<8x128xf32>, vector<128x32xf32>, vector<8x32xf32> -> vector<8x32xf32>
      %c0_18 = arith.constant 0 : index
      %c0_19 = arith.constant 0 : index
      %37 = vector.load %arg4[%c0_18, %c0_19] : memref<1x32xf32, #tpu.memory_space<vmem>>, vector<1x32xf32>
      %38 = vector.broadcast %37 : vector<1x32xf32> to vector<8x32xf32>
      %39 = arith.addf %36, %38 : vector<8x32xf32>
      %cst_20 = arith.constant 0.000000e+00 : f32
      %40 = vector.broadcast %cst_20 : f32 to vector<8x32xf32>
      %41 = arith.maximumf %39, %40 : vector<8x32xf32>
      %42 = math.absf %39 : vector<8x32xf32>
      %cst_21 = arith.constant 0.000000e+00 : f32
      %43 = vector.broadcast %cst_21 : f32 to vector<8x32xf32>
      %44 = arith.subf %43, %42 : vector<8x32xf32>
      %45 = math.exp %44 : vector<8x32xf32>
      %46 = math.log1p %45 : vector<8x32xf32>
      %47 = arith.addf %41, %46 : vector<8x32xf32>
      %cst_22 = arith.constant 0.693147182 : f32
      %48 = vector.broadcast %cst_22 : f32 to vector<8x32xf32>
      %49 = arith.subf %47, %48 : vector<8x32xf32>
      %c0_23 = arith.constant 0 : index
      %c0_24 = arith.constant 0 : index
      %50 = vector.load %arg5[%c0_23, %c0_24] : memref<1x32xf32, #tpu.memory_space<vmem>>, vector<1x32xf32>
      %51 = vector.broadcast %50 : vector<1x32xf32> to vector<8x32xf32>
      %52 = arith.mulf %49, %51 : vector<8x32xf32>
      %cst_25 = arith.constant dense<0.000000e+00> : vector<8xf32>
      %53 = vector.multi_reduction <add>, %52, %cst_25 [1] : vector<8x32xf32> to vector<8xf32>
      %54 = vector.shape_cast %53 : vector<8xf32> to vector<8x1xf32>
      %c0_26 = arith.constant 0 : index
      %c0_27 = arith.constant 0 : index
      %55 = vector.load %arg6[%c0_26, %c0_27] : memref<1x1xf32, #tpu.memory_space<vmem>>, vector<1x1xf32>
      %56 = vector.broadcast %55 : vector<1x1xf32> to vector<8x1xf32>
      %57 = arith.addf %54, %56 : vector<8x1xf32>
      %cst_28 = arith.constant 0.000000e+00 : f32
      %58 = vector.broadcast %cst_28 : f32 to vector<8x1xf32>
      %59 = arith.maximumf %57, %58 : vector<8x1xf32>
      %60 = math.absf %57 : vector<8x1xf32>
      %cst_29 = arith.constant 0.000000e+00 : f32
      %61 = vector.broadcast %cst_29 : f32 to vector<8x1xf32>
      %62 = arith.subf %61, %60 : vector<8x1xf32>
      %63 = math.exp %62 : vector<8x1xf32>
      %64 = math.log1p %63 : vector<8x1xf32>
      %65 = arith.addf %59, %64 : vector<8x1xf32>
      %cst_30 = arith.constant 0.693147182 : f32
      %66 = vector.broadcast %cst_30 : f32 to vector<8x1xf32>
      %67 = arith.subf %65, %66 : vector<8x1xf32>
      %c0_31 = arith.constant 0 : index
      %c0_32 = arith.constant 0 : index
      %68 = vector.load %arg7[%c0_31, %c0_32] : memref<8x1xf32, #tpu.memory_space<vmem>>, vector<8x1xf32>
      tpu.vector_store %arg7[%c0_31, %c0_32], %67 {strides = array<i32>} : memref<8x1xf32, #tpu.memory_space<vmem>>, vector<8x1xf32>,
    } else {
    }
    return
  }
  func.func @transform_0(%arg0: i32) -> (i32, i32) {
    %c0_i32 = arith.constant 0 : i32
    %c0_i32_0 = arith.constant 0 : i32
    return %c0_i32, %arg0 : i32, i32
  }
  func.func @transform_1(%arg0: i32) -> (i32, i32) {
    %c0_i32 = arith.constant 0 : i32
    %c0_i32_0 = arith.constant 0 : i32
    return %arg0, %c0_i32 : i32, i32
  }
  func.func @transform_2(%arg0: i32) -> (i32, i32) {
    %c0_i32 = arith.constant 0 : i32
    %c0_i32_0 = arith.constant 0 : i32
    %c0_i32_1 = arith.constant 0 : i32
    return %c0_i32, %c0_i32_0 : i32, i32
  }
  func.func @transform_3(%arg0: i32) -> (i32, i32) {
    %c0_i32 = arith.constant 0 : i32
    %c0_i32_0 = arith.constant 0 : i32
    %c0_i32_1 = arith.constant 0 : i32
    return %c0_i32, %c0_i32_0 : i32, i32
  }
  func.func @transform_4(%arg0: i32) -> (i32, i32) {
    %c0_i32 = arith.constant 0 : i32
    %c0_i32_0 = arith.constant 0 : i32
    %c0_i32_1 = arith.constant 0 : i32
    return %c0_i32, %c0_i32_0 : i32, i32
  }
  func.func @transform_5(%arg0: i32) -> (i32, i32) {
    %c0_i32 = arith.constant 0 : i32
    %c0_i32_0 = arith.constant 0 : i32
    %c0_i32_1 = arith.constant 0 : i32
    return %c0_i32, %c0_i32_0 : i32, i32
  }
  func.func @transform_6(%arg0: i32) -> (i32, i32) {
    %c0_i32 = arith.constant 0 : i32
    %c0_i32_0 = arith.constant 0 : i32
    %c0_i32_1 = arith.constant 0 : i32
    return %c0_i32, %c0_i32_0 : i32, i32
  }
}

</mosaic_0001>

<llo_original>
// kernel: general_readout_layer.1
$region0: #{general_readout_layer.1}
  #allocation0 [shape = 'u32[]', space=smem, size = 0x4, offset = 0x4, fixed_abs, tag = 'smem constant byte address 0x4 - core index']
  #allocation1 [shape = 'u32[144,128]{1,0:T(1,128)}', space=vmem, size = 0x12000, scoped, tag = 'internal scratch']
  #allocation2 [shape = 'f32[8,128]{1,0:T(8,128)}', space=vmem, size = 0x1000, scoped, tag = 'scratch operand']
  #allocation3 [shape = 'f32[1,1]{1,0:T(1,128)S(1)}', space=vmem, size = 0x200, scoped, tag = 'scoped memory for general_readout_layer.1']
  %s0 = inlined_call_operand.vmem [shape: s32[1,8], index: 0, kind: input, shape index: {}]
  %s1 = inlined_call_operand.vmem [shape: f32[8,128], index: 1, kind: input, shape index: {}]
  %s2 = inlined_call_operand.vmem [shape: f32[128,32], index: 2, kind: input, shape index: {}]
  %s3 = inlined_call_operand.vmem [shape: f32[1,32], index: 3, kind: input, shape index: {}]
  %s4 = inlined_call_operand.vmem [shape: f32[1,32], index: 4, kind: input, shape index: {}]
  %s5 = inlined_call_operand.<no memory space> [shape: f32[1,1], index: 5, kind: input, shape index: {}]
  %s6 = inlined_call_operand.vmem [shape: f32[8,1], index: 6, kind: output, shape index: {}]
  %s7 = sld [smem:[#allocation0]]
  $region42: #{general_readout_layer.1} parent=0
    _
  %s9 = ssub.s32 1, %s7
  %s10 = scalar_select 0, %s9, %s7
  %v11 = vstv %s5
  %12 = vst [vmem:[#allocation3] sm:$0x1] %v11
  // Predicated region
  $region2: #{general_readout_layer.1} parent=0 // pred_check
    _
  $region3: #{general_readout_layer.1} parent=0 // pred_check_branch
    %14 = sbr.rel (0) target = $region5
  $region4: #{general_readout_layer.1} parent=0 // pred_region
    _
  $region5: #{general_readout_layer.1} parent=0 // pred_fallthru
    _
  // Predicated region
  $region6: #{general_readout_layer.1} parent=0 // pred_check
    _
  $region7: #{general_readout_layer.1} parent=0 // pred_check_branch
    %16 = sbr.rel (0) target = $region9
  $region8: #{general_readout_layer.1} parent=0 // pred_region
    _
  $region9: #{general_readout_layer.1} parent=0 // pred_fallthru
    _
  // Predicated region
  $region10: #{general_readout_layer.1} parent=0 // pred_check
    _
  $region11: #{general_readout_layer.1} parent=0 // pred_check_branch
    %18 = sbr.rel (0) target = $region13
  $region12: #{general_readout_layer.1} parent=0 // pred_region
    _
  $region13: #{general_readout_layer.1} parent=0 // pred_fallthru
    _
  // Predicated region
  $region14: #{general_readout_layer.1} parent=0 // pred_check
    _
  $region15: #{general_readout_layer.1} parent=0 // pred_check_branch
    %20 = sbr.rel (0) target = $region17
  $region16: #{general_readout_layer.1} parent=0 // pred_region
    _
  $region17: #{general_readout_layer.1} parent=0 // pred_fallthru
    _
  // Predicated region
  $region18: #{general_readout_layer.1} parent=0 // pred_check
    _
  $region19: #{general_readout_layer.1} parent=0 // pred_check_branch
    %22 = sbr.rel (0) target = $region21
  $region20: #{general_readout_layer.1} parent=0 // pred_region
    _
  $region21: #{general_readout_layer.1} parent=0 // pred_fallthru
    _
  // Predicated region
  $region22: #{general_readout_layer.1} parent=0 // pred_check
    _
  $region23: #{general_readout_layer.1} parent=0 // pred_check_branch
    %24 = sbr.rel (0) target = $region25
  $region24: #{general_readout_layer.1} parent=0 // pred_region
    _
  $region25: #{general_readout_layer.1} parent=0 // pred_fallthru
    _
  %p25 = scmp.eq.s32.totalorder 0, 0
  // Predicated region
  $region26: #{general_readout_layer.1} parent=0 // pred_check
    %p26 = pneg %p25
  $region27: #{general_readout_layer.1} parent=0 // pred_check_branch
    %28 = sbr.rel (%p26) target = $region29
  $region28: #{general_readout_layer.1} parent=0 // pred_region
    %29 = vst [vmem:[#allocation2] sm:$0xff] 0.0
  $region29: #{general_readout_layer.1} parent=0 // pred_fallthru
    _
  %s30 = smul.u32 0, 8
  %v31 = vlaneseq
  %v32 = vshrl.u32 %v31, 7
  %v33 = vstv %s30
  %v34 = vadd.s32 %v33, %v32
  %vm35 = vcmp.lt.s32.totalorder %v34, 8
  %v36 = vld [vmem:[%s1] sm:$0xff]
  %v37 = vsel %vm35, 1, 0
  %vm38 = vcmp.eq.s32.totalorder %v37, 1
  %v39 = vsel %vm38, %v36, 0.0
  %v40 = vlaneseq
  %v41 = vand.u32 %v40, 127
  %v42 = vadd.s32 %v33, %v41
  %vm43 = vcmp.lt.s32.totalorder %v42, 8
  %v44 = vld [vmem:[%s0] sm:$0x1]
  %v45 = vsel %vm43, %v44, 4294967295
  %v46 = vlaneseq
  %v47 = vshrl.u32 %v46, 7
  %v48 = vsub.s32 0, %v47
  %v49 = vrot.slane %v45, %v48
  %vm50 = vcmp.eq.s32.totalorder %v32, %v49
  %v51 = vsel %vm50, 1, 0
  %v52 = vcvt.s32.f32 %v51
  %v53 = vld [vmem:[#allocation2] sm:$0xff]
  %vm54 = vcmask 64512
  %v56 = vsel %vm54, %v52, 0
  %58 = vmatprep.subr.mxu0 0.0
  %59 = vmatpush1.msra.mxu0 0.0
  %60 = vmatprep.subr.mxu0 0.0
  %61 = vmatpush1.msra.mxu0 0.0
  %62 = vmatprep.subr.mxu0 0.0
  %63 = vmatpush1.msra.mxu0 0.0
  %64 = vmatprep.subr.mxu0 0.0
  %65 = vmatpush1.msra.mxu0 0.0
  %66 = vmatprep.subr.mxu0 0.0
  %67 = vmatpush1.msra.mxu0 0.0
  %68 = vmatprep.subr.mxu0 0.0
  %69 = vmatpush1.msra.mxu0 0.0
  %70 = vmatprep.subr.mxu0 0.0
  %71 = vmatpush1.msra.mxu0 0.0
  %72 = vmatprep.subr.mxu0 0.0
  %73 = vmatpush1.msra.mxu0 0.0
  %74 = vmatprep.subr.mxu0 0.0
  %75 = vmatpush1.msra.mxu0 0.0
  %76 = vmatprep.subr.mxu0 0.0
  %77 = vmatpush1.msra.mxu0 0.0
  %78 = vmatprep.subr.mxu0 0.0
  %79 = vmatpush1.msra.mxu0 0.0
  %80 = vmatprep.subr.mxu0 0.0
  %81 = vmatpush1.msra.mxu0 0.0
  %82 = vmatprep.subr.mxu0 0.0
  %83 = vmatpush1.msra.mxu0 0.0
  %84 = vmatprep.subr.mxu0 0.0
  %85 = vmatpush1.msra.mxu0 0.0
  %86 = vmatprep.subr.mxu0 0.0
  %87 = vmatpush1.msra.mxu0 0.0
  %88 = vmatprep.subr.mxu0 0.0
  %89 = vmatpush1.msra.mxu0 %v39
  %90 = vmatprep.subr.mxu0 0.0
  %91 = vmatpush2.msra.mxu0 0.0
  %92 = vmatprep.subr.mxu0 0.0
  %93 = vmatpush2.msra.mxu0 0.0
  %94 = vmatprep.subr.mxu0 0.0
  %95 = vmatpush2.msra.mxu0 0.0
  %96 = vmatprep.subr.mxu0 0.0
  %97 = vmatpush2.msra.mxu0 0.0
  %98 = vmatprep.subr.mxu0 0.0
  %99 = vmatpush2.msra.mxu0 0.0
  %100 = vmatprep.subr.mxu0 0.0
  %101 = vmatpush2.msra.mxu0 0.0
  %102 = vmatprep.subr.mxu0 0.0
  %103 = vmatpush2.msra.mxu0 0.0
  %104 = vmatprep.subr.mxu0 0.0
  %105 = vmatpush2.msra.mxu0 0.0
  %106 = vmatprep.subr.mxu0 0.0
  %107 = vmatpush2.msra.mxu0 0.0
  %108 = vmatprep.subr.mxu0 0.0
  %109 = vmatpush2.msra.mxu0 0.0
  %110 = vmatprep.subr.mxu0 0.0
  %111 = vmatpush2.msra.mxu0 0.0
  %112 = vmatprep.subr.mxu0 0.0
  %113 = vmatpush2.msra.mxu0 0.0
  %114 = vmatprep.subr.mxu0 0.0
  %115 = vmatpush2.msra.mxu0 0.0
  %116 = vmatprep.subr.mxu0 0.0
  %117 = vmatpush2.msra.mxu0 0.0
  %118 = vmatprep.subr.mxu0 0.0
  %119 = vmatpush2.msra.mxu0 0.0
  %120 = vmatprep.subr.mxu0 0.0
  %121 = vmatpush2.msra.mxu0 0.0
  %122 = vmatprep.mubr.f32.mxu0 0.0
  %123 = vmatmul.mubr.f32.gmra.mxu0 %v56
  %v124 = vpop.f32.mrf.mxu0
  %v125 = vadd.f32 0.0, %v124
  %v126 = vpop.f32.mrf.mxu0
  %127 = vdwg.mxu0
  %v128 = vadd.f32 %v53, %v125
  %129 = vst [vmem:[#allocation2] sm:$0xff] %v128
  // Predicated region
  $region30: #{general_readout_layer.1} parent=0 // pred_check
    %p130 = pneg %p25
  $region31: #{general_readout_layer.1} parent=0 // pred_check_branch
    %132 = sbr.rel (%p130) target = $region33
  $region32: #{general_readout_layer.1} parent=0 // pred_region
    %v133 = vld [vmem:[#allocation2] sm:$0xff]
    %v134 = vld [vmem:[%s2] sm:$0xff]
    %v135 = vld [vmem:[%s2 + $0x8] sm:$0xff]
    %v136 = vld [vmem:[%s2 + $0x10] sm:$0xff]
    %v137 = vld [vmem:[%s2 + $0x18] sm:$0xff]
    %v138 = vld [vmem:[%s2 + $0x20] sm:$0xff]
    %v139 = vld [vmem:[%s2 + $0x28] sm:$0xff]
    %v140 = vld [vmem:[%s2 + $0x30] sm:$0xff]
    %v141 = vld [vmem:[%s2 + $0x38] sm:$0xff]
    %v142 = vld [vmem:[%s2 + $0x40] sm:$0xff]
    %v143 = vld [vmem:[%s2 + $0x48] sm:$0xff]
    %v144 = vld [vmem:[%s2 + $0x50] sm:$0xff]
    %v145 = vld [vmem:[%s2 + $0x58] sm:$0xff]
    %v146 = vld [vmem:[%s2 + $0x60] sm:$0xff]
    %v147 = vld [vmem:[%s2 + $0x68] sm:$0xff]
    %v148 = vld [vmem:[%s2 + $0x70] sm:$0xff]
    %v149 = vld [vmem:[%s2 + $0x78] sm:$0xff]
    %v150 = vld [vmem:[%s3] sm:$0x1]
    %v152 = vlaneseq
    %v153 = vshrl.u32 %v152, 7
    %v154 = vsub.s32 0, %v153
    %v155 = vrot.slane %v150, %v154
    %157 = vmatprep.subr.mxu0 0.0
    %158 = vmatpush1.msra.mxu0 %v149
    %159 = vmatprep.subr.mxu0 0.0
    %160 = vmatpush1.msra.mxu0 %v148
    %161 = vmatprep.subr.mxu0 0.0
    %162 = vmatpush1.msra.mxu0 %v147
    %163 = vmatprep.subr.mxu0 0.0
    %164 = vmatpush1.msra.mxu0 %v146
    %165 = vmatprep.subr.mxu0 0.0
    %166 = vmatpush1.msra.mxu0 %v145
    %167 = vmatprep.subr.mxu0 0.0
    %168 = vmatpush1.msra.mxu0 %v144
    %169 = vmatprep.subr.mxu0 0.0
    %170 = vmatpush1.msra.mxu0 %v143
    %171 = vmatprep.subr.mxu0 0.0
    %172 = vmatpush1.msra.mxu0 %v142
    %173 = vmatprep.subr.mxu0 0.0
    %174 = vmatpush1.msra.mxu0 %v141
    %175 = vmatprep.subr.mxu0 0.0
    %176 = vmatpush1.msra.mxu0 %v140
    %177 = vmatprep.subr.mxu0 0.0
    %178 = vmatpush1.msra.mxu0 %v139
    %179 = vmatprep.subr.mxu0 0.0
    %180 = vmatpush1.msra.mxu0 %v138
    %181 = vmatprep.subr.mxu0 0.0
    %182 = vmatpush1.msra.mxu0 %v137
    %183 = vmatprep.subr.mxu0 0.0
    %184 = vmatpush1.msra.mxu0 %v136
    %185 = vmatprep.subr.mxu0 0.0
    %186 = vmatpush1.msra.mxu0 %v135
    %187 = vmatprep.subr.mxu0 0.0
    %188 = vmatpush1.msra.mxu0 %v134
    %189 = vmatprep.subr.mxu0 0.0
    %190 = vmatpush2.msra.mxu0 0.0
    %191 = vmatprep.subr.mxu0 0.0
    %192 = vmatpush2.msra.mxu0 0.0
    %193 = vmatprep.subr.mxu0 0.0
    %194 = vmatpush2.msra.mxu0 0.0
    %195 = vmatprep.subr.mxu0 0.0
    %196 = vmatpush2.msra.mxu0 0.0
    %197 = vmatprep.subr.mxu0 0.0
    %198 = vmatpush2.msra.mxu0 0.0
    %199 = vmatprep.subr.mxu0 0.0
    %200 = vmatpush2.msra.mxu0 0.0
    %201 = vmatprep.subr.mxu0 0.0
    %202 = vmatpush2.msra.mxu0 0.0
    %203 = vmatprep.subr.mxu0 0.0
    %204 = vmatpush2.msra.mxu0 0.0
    %205 = vmatprep.subr.mxu0 0.0
    %206 = vmatpush2.msra.mxu0 0.0
    %207 = vmatprep.subr.mxu0 0.0
    %208 = vmatpush2.msra.mxu0 0.0
    %209 = vmatprep.subr.mxu0 0.0
    %210 = vmatpush2.msra.mxu0 0.0
    %211 = vmatprep.subr.mxu0 0.0
    %212 = vmatpush2.msra.mxu0 0.0
    %213 = vmatprep.subr.mxu0 0.0
    %214 = vmatpush2.msra.mxu0 0.0
    %215 = vmatprep.subr.mxu0 0.0
    %216 = vmatpush2.msra.mxu0 0.0
    %217 = vmatprep.subr.mxu0 0.0
    %218 = vmatpush2.msra.mxu0 0.0
    %219 = vmatprep.subr.mxu0 0.0
    %220 = vmatpush2.msra.mxu0 0.0
    %221 = vmatprep.mubr.f32.mxu0 0.0
    %222 = vmatmul.mubr.f32.gmra.mxu0 %v133
    %v223 = vpop.f32.mrf.mxu0
    %v224 = vadd.f32 %v155, %v223
    %v225 = vpop.f32.mrf.mxu0
    %226 = vdwg.mxu0
    %v227 = vmax.f32 %v224, 0.0
    %v228 = vand.u32 2147483647, %v224
    %v229 = vsub.f32 0.0, %v228
    %v230 = vmul.f32 %v229, 1.442695
    %v231 = vpow.pop %v230
    %v232 = vadd.f32 %v231, 1.0
    %v233 = vlog2.pop %v232
    %v234 = vmul.f32 %v233, 0.6931472
    %v235 = vmul.f32 -0.5, %v231
    %v236 = vadd.f32 %v235, 1.0
    %v237 = vmul.f32 %v236, %v231
    %v238 = vand.u32 2147483647, %v231
    %vm239 = vcmp.lt.f32.partialorder %v238, 0.0004427343
    %v240 = vsel %vm239, %v237, %v234
    %v241 = vadd.f32 %v227, %v240
    %v242 = vsub.f32 %v241, 0.6931472
    %v243 = vld [vmem:[%s4] sm:$0x1]
    %v245 = vlaneseq
    %v246 = vshrl.u32 %v245, 7
    %v247 = vsub.s32 0, %v246
    %v248 = vrot.slane %v243, %v247
    %v250 = vmul.f32 %v242, %v248
    %vm251 = vcmask 261120
    %v252 = vsel %vm251, %v250, 0.0
    %253 = vadd.xlane.f32.xlu0 %v252
    %v254 = vpop.xlane.xlu0 %253
    %v255 = vld [vmem:[#allocation3] sm:$0x1]
    %v257 = vlaneseq
    %v258 = vshrl.u32 %v257, 7
    %v259 = vsub.s32 0, %v258
    %v260 = vrot.slane %v255, %v259
    %v262 = vadd.f32 %v254, %v260
    %v263 = vmax.f32 %v262, 0.0
    %v264 = vand.u32 2147483647, %v262
    %v265 = vsub.f32 0.0, %v264
    %v266 = vmul.f32 %v265, 1.442695
    %v267 = vpow.pop %v266
    %v268 = vadd.f32 %v267, 1.0
    %v269 = vlog2.pop %v268
    %v270 = vmul.f32 %v269, 0.6931472
    %v271 = vmul.f32 -0.5, %v267
    %v272 = vadd.f32 %v271, 1.0
    %v273 = vmul.f32 %v272, %v267
    %v274 = vand.u32 2147483647, %v267
    %vm275 = vcmp.lt.f32.partialorder %v274, 0.0004427343
    %v276 = vsel %vm275, %v273, %v270
    %v277 = vadd.f32 %v263, %v276
    %v278 = vsub.f32 %v277, 0.6931472
    %vm279 = vcmask 7168
    %280 = vst.msk [vmem:[%s6] sm:$0xff] %vm279, %v278
  $region33: #{general_readout_layer.1} parent=0 // pred_fallthru
    _
  // Predicated region
  $region34: #{general_readout_layer.1} parent=0 // pred_check
    _
  $region35: #{general_readout_layer.1} parent=0 // pred_check_branch
    %282 = sbr.rel (0) target = $region37
  $region36: #{general_readout_layer.1} parent=0 // pred_region
    _
  $region37: #{general_readout_layer.1} parent=0 // pred_fallthru
    _
  // Predicated region
  $region38: #{general_readout_layer.1} parent=0 // pred_check
    _
  $region39: #{general_readout_layer.1} parent=0 // pred_check_branch
    %284 = sbr.rel (0) target = $region41
  $region40: #{general_readout_layer.1} parent=0 // pred_region
    _
  $region41: #{general_readout_layer.1} parent=0 // pred_fallthru
    _

</llo_original>
